<compile_context>
chip_gen: v6e
topology: v6e:2x2x1
jax: 0.10.0
libtpu: 0.0.40
codegen_flags: <defaults>
</compile_context>

<pallas_src>
import functools

import jax
import jax.numpy as jnp
from jax.experimental import pallas as pl
from jax.experimental.pallas import tpu as pltpu


def _decomp_kernel(x_ref, *refs, kernel_size, pad, halo8, strip_rows,
                   multi_tile):
    if multi_tile:
        prev_ref, next_ref, res_ref, mean_ref, xbuf_ref = refs
    else:
        prev_ref = next_ref = None
        res_ref, mean_ref, xbuf_ref = refs

    TL, C = x_ref.shape
    R = xbuf_ref.shape[0]
    k = kernel_size
    delta = halo8 - pad               # 0..7, keeps the tile body 8-aligned
    SR = strip_rows
    num_strips = TL // SR
    n_loads = (k - 1 + delta) // 8 + 1

    # ---- Stage the edge-padded tile into the aligned scratch buffer. ------
    # xbuf rows: [0, delta)           zero filler (loaded but never used)
    #            [delta, halo8)       front padding (prev tail / replicated row 0)
    #            [halo8, halo8+TL)    tile body (aligned stores)
    #            [halo8+TL, +pad)     back padding (next head / replicated last row)
    #            [halo8+TL+pad, R)    zero filler
    if delta > 0:
        xbuf_ref[pl.ds(0, delta), :] = jnp.zeros((delta, C), x_ref.dtype)
    tail0 = halo8 + TL + pad
    if R > tail0:
        xbuf_ref[pl.ds(tail0, R - tail0), :] = jnp.zeros((R - tail0, C),
                                                         x_ref.dtype)

    # Copy the tile body in SR-row chunks (bounded vreg pressure, aligned).
    @pl.loop(0, num_strips)
    def _stage(i):
        o = pl.multiple_of(i * SR, 8)
        xbuf_ref[pl.ds(halo8 + o, SR), :] = x_ref[pl.ds(o, SR), :]

    l = pl.program_id(1)
    num_l = pl.num_programs(1)

    if multi_tile:
        @pl.when(l > 0)
        def _front_halo():
            xbuf_ref[pl.ds(delta, pad), :] = prev_ref[pl.ds(delta, pad), :]

        @pl.when(l == 0)
        def _front_edge():
            row0 = x_ref[pl.ds(0, 1), :]
            xbuf_ref[pl.ds(delta, pad), :] = jnp.broadcast_to(row0, (pad, C))

        @pl.when(l < num_l - 1)
        def _back_halo():
            xbuf_ref[pl.ds(halo8 + TL, pad), :] = next_ref[pl.ds(0, pad), :]

        @pl.when(l == num_l - 1)
        def _back_edge():
            rowl = x_ref[pl.ds(TL - 1, 1), :]
            xbuf_ref[pl.ds(halo8 + TL, pad), :] = jnp.broadcast_to(rowl,
                                                                   (pad, C))
    else:
        row0 = x_ref[pl.ds(0, 1), :]
        rowl = x_ref[pl.ds(TL - 1, 1), :]
        xbuf_ref[pl.ds(delta, pad), :] = jnp.broadcast_to(row0, (pad, C))
        xbuf_ref[pl.ds(halo8 + TL, pad), :] = jnp.broadcast_to(rowl, (pad, C))

    # ---- Sliding-window sum, strip by strip, with aligned loads. ----------
    # Tap d of output row u (within a strip) reads xbuf[base + u + d + delta].
    # Writing d + delta = 8*j + r, the tap is row (u + r) of the aligned load
    # L_j = xbuf[base + 8j : base + 8j + SR + 8].  Group taps by residue r:
    # each class is a sum of aligned loads followed by ONE shifted slice.
    classes = {}
    for d in range(k):
        j, r = divmod(d + delta, 8)
        classes.setdefault(r, []).append(j)
    inv_k = float(1.0 / k)

    @pl.loop(0, num_strips)
    def _strip(s):
        base = pl.multiple_of(s * SR, 8)
        loads = [
            xbuf_ref[pl.ds(pl.multiple_of(base + 8 * j, 8), SR + 8), :]
            .astype(jnp.float32)
            for j in range(n_loads)
        ]
        acc = None
        for r in sorted(classes):
            js = classes[r]
            csum = loads[js[0]]
            for j in js[1:]:
                csum = csum + loads[j]
            part = csum[r:r + SR, :]          # single static sublane shift
            acc = part if acc is None else acc + part
        mean = acc * inv_k

        x_strip = x_ref[pl.ds(base, SR), :].astype(jnp.float32)
        mean_ref[pl.ds(base, SR), :] = mean.astype(mean_ref.dtype)
        res_ref[pl.ds(base, SR), :] = (x_strip - mean).astype(res_ref.dtype)


def _pick_tile_rows(L8, C, halo8, itemsize, batch, target_bytes):
    """Largest multiple of halo8 dividing L8 with ~target_bytes blocks;
    prefers an even total grid when batch is small (v7x two-core split)."""
    cands = [d for d in range(halo8, L8 + 1, halo8) if L8 % d == 0]
    if L8 not in cands:
        cands.append(L8)
    fits = [d for d in cands if d * C * itemsize <= target_bytes] or [min(cands)]

    def score(d):
        steps = batch * (L8 // d)
        return (steps >= 2 and steps % 2 == 0, d)

    return max(fits, key=score)


def _pick_strip_rows(TL, C, n_loads, budget_bytes=160 * 1024):
    """Largest strip (multiple of 8 dividing TL) whose live f32 values stay
    comfortably inside the 64x4KiB vreg file."""
    c_pad = ((max(C, 128) + 127) // 128) * 128
    best = 8
    for s in range(8, min(TL, 128) + 1, 8):
        if TL % s:
            continue
        live = (n_loads + 3) * (s + 8) * c_pad * 4
        if live <= budget_bytes:
            best = s
    return best


def series_decomposition(x: jax.Array, kernel_size: int, *, tile_rows=None,
                         block_target_bytes=2 * 1024 * 1024):
    """x: (B, L, C). Returns (res, moving_mean), both (B, L, C)."""
    assert kernel_size >= 1
    B, L, C = x.shape
    if kernel_size == 1:
        return jnp.zeros_like(x), x
    if kernel_size % 2 == 0:
        raise NotImplementedError(
            "even kernel_size changes the output length in the reference "
            "module; only odd kernel sizes are supported")

    pad = (kernel_size - 1) // 2
    halo8 = ((pad + 7) // 8) * 8
    delta = halo8 - pad

    # Pad L to a multiple of 8 by replicating the last row: identical results
    # for the first L outputs (replicas coincide with the end replication).
    L8 = ((L + 7) // 8) * 8
    if L8 != L:
        tail = jnp.broadcast_to(x[:, L - 1:L, :], (B, L8 - L, C))
        xp = jnp.concatenate([x, tail], axis=1)
    else:
        xp = x

    itemsize = x.dtype.itemsize
    TL = tile_rows if tile_rows is not None else _pick_tile_rows(
        L8, C, halo8, itemsize, B, block_target_bytes)
    if L8 % TL != 0:
        raise ValueError(f"tile_rows={TL} must divide padded length {L8}")
    num_l = L8 // TL
    if num_l > 1 and TL % halo8 != 0:
        raise ValueError(f"tile_rows={TL} must be a multiple of {halo8} when "
                         f"the sequence axis is tiled")
    multi = num_l > 1

    n_loads = (kernel_size - 1 + delta) // 8 + 1
    scratch_rows = TL + 8 * n_loads
    SR = _pick_strip_rows(TL, C, n_loads)

    kernel = functools.partial(
        _decomp_kernel, kernel_size=kernel_size, pad=pad, halo8=halo8,
        strip_rows=SR, multi_tile=multi)

    x_spec = pl.BlockSpec((None, TL, C), lambda b, l: (b, l, 0))
    out_spec = pl.BlockSpec((None, TL, C), lambda b, l: (b, l, 0))
    in_specs = [x_spec]
    operands = [xp]
    if multi:
        r_blk = TL // halo8
        nhb = L8 // halo8
        prev_spec = pl.BlockSpec(
            (None, halo8, C),
            lambda b, l: (b, jnp.maximum(l * r_blk - 1, 0), 0))
        next_spec = pl.BlockSpec(
            (None, halo8, C),
            lambda b, l: (b, jnp.minimum((l + 1) * r_blk, nhb - 1), 0))
        in_specs += [prev_spec, next_spec]
        operands += [xp, xp]

    cost = pl.CostEstimate(
        flops=(kernel_size + 1) * B * L8 * C,
        transcendentals=0,
        bytes_accessed=(3 * B * L8 * C
                        + (2 * B * num_l * halo8 * C if multi else 0))
        * itemsize,
    )

    res, mean = pl.pallas_call(
        kernel,
        out_shape=(
            jax.ShapeDtypeStruct((B, L8, C), x.dtype),
            jax.ShapeDtypeStruct((B, L8, C), x.dtype),
        ),
        grid_spec=pltpu.PrefetchScalarGridSpec(
            num_scalar_prefetch=0,
            grid=(B, num_l),
            in_specs=in_specs,
            out_specs=(out_spec, out_spec),
            scratch_shapes=[pltpu.VMEM((scratch_rows, C), x.dtype)],
        ),
        compiler_params=pltpu.CompilerParams(
            dimension_semantics=("parallel", "parallel"),
            vmem_limit_bytes=32 * 1024 * 1024,
        ),
        cost_estimate=cost,
    )(*operands)

    if L8 != L:
        res, mean = res[:, :L], mean[:, :L]
    return res, mean


def _reference(x, kernel_size):
    # Pure-JAX reference matching the PyTorch forward (odd kernel_size).
    pad = (kernel_size - 1) // 2
    front = jnp.repeat(x[:, 0:1, :], pad, axis=1)
    end = jnp.repeat(x[:, -1:, :], pad, axis=1)
    padded = jnp.concatenate([front, x, end], axis=1)
    L = x.shape[1]
    acc = jnp.zeros(x.shape, dtype=jnp.float32)
    for d in range(kernel_size):
        acc = acc + padded[:, d:d + L, :].astype(jnp.float32)
    mean = (acc / kernel_size).astype(x.dtype)
    return x - mean, mean


if __name__ == "__main__":
    key = jax.random.PRNGKey(0)
    cases = [
        # (B, L, C, kernel_size, tile_rows)
        (2, 96, 128, 25, 32),    # multi-tile path with halos, lane-dense C
        (3, 40, 32, 5, 8),       # multi-tile, small window, narrow channels
        (2, 21, 16, 9, None),    # L not multiple of 8 -> wrapper-padded tile
        (2, 96, 128, 25, None),  # automatic tile selection (single tile)
        (1, 128, 128, 13, None), # batch 1 -> picker prefers an even grid
    ]
    for idx, (B, L, C, k, TL) in enumerate(cases):
        key, sub = jax.random.split(key)
        x = jax.random.normal(sub, (B, L, C), dtype=jnp.float32)
        res, mean = series_decomposition(x, k, tile_rows=TL)
        jax.block_until_ready((res, mean))
        res_ref, mean_ref = _reference(x, k)
        assert jnp.allclose(mean, mean_ref, atol=1e-5, rtol=1e-5), \
            f"mean mismatch in case {idx}"
        assert jnp.allclose(res, res_ref, atol=1e-5, rtol=1e-5), \
            f"res mismatch in case {idx}"

    print("KERNEL_OK")
</pallas_src>

<mosaic_0001>
module attributes {stable_mosaic.version = 11 : i64} {
  func.func @_decomp_kernel(%arg0: i32, %arg1: i32, %arg2: memref<1x32x128xf32, #tpu.memory_space<vmem>>, %arg3: memref<1x16x128xf32, #tpu.memory_space<vmem>>, %arg4: memref<1x16x128xf32, #tpu.memory_space<vmem>>, %arg5: memref<1x32x128xf32, #tpu.memory_space<vmem>>, %arg6: memref<1x32x128xf32, #tpu.memory_space<vmem>>, %arg7: memref<64x128xf32, #tpu.memory_space<vmem>>) attributes {dimension_semantics = [#tpu.dimension_semantics<parallel>, #tpu.dimension_semantics<parallel>], iteration_bounds = array<i64: 2, 3>, scalar_prefetch = 0 : i64, scratch_operands = 1 : i64, tpu.core_type = #tpu.core_type<tc>, window_params = [{transform_indices = @transform_0, window_bounds = array<i64: 1, 32, 128>}, {transform_indices = @transform_1, window_bounds = array<i64: 1, 16, 128>}, {transform_indices = @transform_2, window_bounds = array<i64: 1, 16, 128>}, {transform_indices = @transform_3, window_bounds = array<i64: 1, 32, 128>}, {transform_indices = @transform_4, window_bounds = array<i64: 1, 32, 128>}]} {
    %cst = arith.constant 0.000000e+00 : f32
    %0 = vector.broadcast %cst : f32 to vector<4x128xf32>
    %c0 = arith.constant 0 : index
    %c0_0 = arith.constant 0 : index
    %1 = vector.load %arg7[%c0, %c0_0] : memref<64x128xf32, #tpu.memory_space<vmem>>, vector<4x128xf32>
    tpu.vector_store %arg7[%c0, %c0_0], %0 {strides = array<i32>} : memref<64x128xf32, #tpu.memory_space<vmem>>, vector<4x128xf32>,
    %cst_1 = arith.constant 0.000000e+00 : f32
    %2 = vector.broadcast %cst_1 : f32 to vector<4x128xf32>
    %c60 = arith.constant 60 : index
    %c0_2 = arith.constant 0 : index
    %3 = vector.load %arg7[%c60, %c0_2] : memref<64x128xf32, #tpu.memory_space<vmem>>, vector<4x128xf32>
    tpu.vector_store %arg7[%c60, %c0_2], %2 {strides = array<i32>} : memref<64x128xf32, #tpu.memory_space<vmem>>, vector<4x128xf32>,
    %c0_i32 = arith.constant 0 : i32
    %c1_i32 = arith.constant 1 : i32
    %4 = arith.muli %c0_i32, %c1_i32 : i32
    %c0_i32_3 = arith.constant 0 : i32
    %5 = arith.addi %c0_i32_3, %4 : i32
    %c32_i32 = arith.constant 32 : i32
    %6 = arith.muli %5, %c32_i32 : i32
    %7 = tpu.assume_multiple %6, 8 : i32
    %c0_4 = arith.constant 0 : index
    %8 = arith.index_cast %7 : i32 to index
    %c0_5 = arith.constant 0 : index
    %9 = vector.load %arg2[%c0_4, %8, %c0_5] : memref<1x32x128xf32, #tpu.memory_space<vmem>>, vector<1x32x128xf32>
    %10 = vector.shape_cast %9 : vector<1x32x128xf32> to vector<32x128xf32>
    %c16_i32 = arith.constant 16 : i32
    %11 = arith.addi %c16_i32, %7 : i32
    %12 = arith.index_cast %11 : i32 to index
    %c0_6 = arith.constant 0 : index
    %13 = vector.load %arg7[%12, %c0_6] : memref<64x128xf32, #tpu.memory_space<vmem>>, vector<32x128xf32>
    tpu.vector_store %arg7[%12, %c0_6], %10 {strides = array<i32>} : memref<64x128xf32, #tpu.memory_space<vmem>>, vector<32x128xf32>,
    %c1_i32_7 = arith.constant 1 : i32
    %c0_i32_8 = arith.constant 0 : i32
    %14 = arith.cmpi sgt, %arg1, %c0_i32_8 : i32
    %15 = arith.extui %14 : i1 to i32
    %c0_i32_9 = arith.constant 0 : i32
    %16 = arith.cmpi ne, %15, %c0_i32_9 : i32
    scf.if %16 {
      %c0_33 = arith.constant 0 : index
      %c4 = arith.constant 4 : index
      %c0_34 = arith.constant 0 : index
      %92 = vector.load %arg3[%c0_33, %c4, %c0_34] : memref<1x16x128xf32, #tpu.memory_space<vmem>>, vector<1x12x128xf32>
      %93 = vector.shape_cast %92 : vector<1x12x128xf32> to vector<12x128xf32>
      %c4_35 = arith.constant 4 : index
      %c0_36 = arith.constant 0 : index
      %94 = vector.load %arg7[%c4_35, %c0_36] : memref<64x128xf32, #tpu.memory_space<vmem>>, vector<12x128xf32>
      tpu.vector_store %arg7[%c4_35, %c0_36], %93 {strides = array<i32>} : memref<64x128xf32, #tpu.memory_space<vmem>>, vector<12x128xf32>,
    } else {
    }
    %c0_i32_10 = arith.constant 0 : i32
    %17 = arith.cmpi eq, %arg1, %c0_i32_10 : i32
    %18 = arith.extui %17 : i1 to i32
    %c0_i32_11 = arith.constant 0 : i32
    %19 = arith.cmpi ne, %18, %c0_i32_11 : i32
    scf.if %19 {
      %c0_33 = arith.constant 0 : index
      %c0_34 = arith.constant 0 : index
      %c0_35 = arith.constant 0 : index
      %92 = vector.load %arg2[%c0_33, %c0_34, %c0_35] : memref<1x32x128xf32, #tpu.memory_space<vmem>>, vector<1x1x128xf32>
      %93 = vector.shape_cast %92 : vector<1x1x128xf32> to vector<1x128xf32>
      %94 = vector.shape_cast %93 : vector<1x128xf32> to vector<1x128xf32>
      %95 = vector.broadcast %94 : vector<1x128xf32> to vector<12x128xf32>
      %c4 = arith.constant 4 : index
      %c0_36 = arith.constant 0 : index
      %96 = vector.load %arg7[%c4, %c0_36] : memref<64x128xf32, #tpu.memory_space<vmem>>, vector<12x128xf32>
      tpu.vector_store %arg7[%c4, %c0_36], %95 {strides = array<i32>} : memref<64x128xf32, #tpu.memory_space<vmem>>, vector<12x128xf32>,
    } else {
    }
    %c2_i32 = arith.constant 2 : i32
    %20 = arith.cmpi slt, %arg1, %c2_i32 : i32
    %21 = arith.extui %20 : i1 to i32
    %c0_i32_12 = arith.constant 0 : i32
    %22 = arith.cmpi ne, %21, %c0_i32_12 : i32
    scf.if %22 {
      %c0_33 = arith.constant 0 : index
      %c0_34 = arith.constant 0 : index
      %c0_35 = arith.constant 0 : index
      %92 = vector.load %arg4[%c0_33, %c0_34, %c0_35] : memref<1x16x128xf32, #tpu.memory_space<vmem>>, vector<1x12x128xf32>
      %93 = vector.shape_cast %92 : vector<1x12x128xf32> to vector<12x128xf32>
      %c48 = arith.constant 48 : index
      %c0_36 = arith.constant 0 : index
      %94 = vector.load %arg7[%c48, %c0_36] : memref<64x128xf32, #tpu.memory_space<vmem>>, vector<12x128xf32>
      tpu.vector_store %arg7[%c48, %c0_36], %93 {strides = array<i32>} : memref<64x128xf32, #tpu.memory_space<vmem>>, vector<12x128xf32>,
    } else {
    }
    %c2_i32_13 = arith.constant 2 : i32
    %23 = arith.cmpi eq, %arg1, %c2_i32_13 : i32
    %24 = arith.extui %23 : i1 to i32
    %c0_i32_14 = arith.constant 0 : i32
    %25 = arith.cmpi ne, %24, %c0_i32_14 : i32
    scf.if %25 {
      %c0_33 = arith.constant 0 : index
      %c31 = arith.constant 31 : index
      %c0_34 = arith.constant 0 : index
      %92 = vector.load %arg2[%c0_33, %c31, %c0_34] : memref<1x32x128xf32, #tpu.memory_space<vmem>>, vector<1x1x128xf32>
      %93 = vector.shape_cast %92 : vector<1x1x128xf32> to vector<1x128xf32>
      %94 = vector.shape_cast %93 : vector<1x128xf32> to vector<1x128xf32>
      %95 = vector.broadcast %94 : vector<1x128xf32> to vector<12x128xf32>
      %c48 = arith.constant 48 : index
      %c0_35 = arith.constant 0 : index
      %96 = vector.load %arg7[%c48, %c0_35] : memref<64x128xf32, #tpu.memory_space<vmem>>, vector<12x128xf32>
      tpu.vector_store %arg7[%c48, %c0_35], %95 {strides = array<i32>} : memref<64x128xf32, #tpu.memory_space<vmem>>, vector<12x128xf32>,
    } else {
    }
    %c0_i32_15 = arith.constant 0 : i32
    %c1_i32_16 = arith.constant 1 : i32
    %26 = arith.muli %c0_i32_15, %c1_i32_16 : i32
    %c0_i32_17 = arith.constant 0 : i32
    %27 = arith.addi %c0_i32_17, %26 : i32
    %c32_i32_18 = arith.constant 32 : i32
    %28 = arith.muli %27, %c32_i32_18 : i32
    %29 = tpu.assume_multiple %28, 8 : i32
    %c0_i32_19 = arith.constant 0 : i32
    %30 = arith.addi %29, %c0_i32_19 : i32
    %31 = tpu.assume_multiple %30, 8 : i32
    %32 = arith.index_cast %31 : i32 to index
    %c0_20 = arith.constant 0 : index
    %33 = vector.load %arg7[%32, %c0_20] : memref<64x128xf32, #tpu.memory_space<vmem>>, vector<40x128xf32>
    %c8_i32 = arith.constant 8 : i32
    %34 = arith.addi %29, %c8_i32 : i32
    %35 = tpu.assume_multiple %34, 8 : i32
    %36 = arith.index_cast %35 : i32 to index
    %c0_21 = arith.constant 0 : index
    %37 = vector.load %arg7[%36, %c0_21] : memref<64x128xf32, #tpu.memory_space<vmem>>, vector<40x128xf32>
    %c16_i32_22 = arith.constant 16 : i32
    %38 = arith.addi %29, %c16_i32_22 : i32
    %39 = tpu.assume_multiple %38, 8 : i32
    %40 = arith.index_cast %39 : i32 to index
    %c0_23 = arith.constant 0 : index
    %41 = vector.load %arg7[%40, %c0_23] : memref<64x128xf32, #tpu.memory_space<vmem>>, vector<40x128xf32>
    %c24_i32 = arith.constant 24 : i32
    %42 = arith.addi %29, %c24_i32 : i32
    %43 = tpu.assume_multiple %42, 8 : i32
    %44 = arith.index_cast %43 : i32 to index
    %c0_24 = arith.constant 0 : index
    %45 = vector.load %arg7[%44, %c0_24] : memref<64x128xf32, #tpu.memory_space<vmem>>, vector<40x128xf32>
    %46 = arith.addf %37, %41 : vector<40x128xf32>
    %47 = arith.addf %46, %45 : vector<40x128xf32>
    %48 = vector.extract_strided_slice %47 {offsets = [0, 0], sizes = [32, 128], strides = [1, 1]} : vector<40x128xf32> to vector<32x128xf32>
    %49 = arith.addf %37, %41 : vector<40x128xf32>
    %50 = arith.addf %49, %45 : vector<40x128xf32>
    %51 = vector.extract_strided_slice %50 {offsets = [1, 0], sizes = [32, 128], strides = [1, 1]} : vector<40x128xf32> to vector<32x128xf32>
    %52 = arith.addf %48, %51 : vector<32x128xf32>
    %53 = arith.addf %37, %41 : vector<40x128xf32>
    %54 = arith.addf %53, %45 : vector<40x128xf32>
    %55 = vector.extract_strided_slice %54 {offsets = [2, 0], sizes = [32, 128], strides = [1, 1]} : vector<40x128xf32> to vector<32x128xf32>
    %56 = arith.addf %52, %55 : vector<32x128xf32>
    %57 = arith.addf %37, %41 : vector<40x128xf32>
    %58 = arith.addf %57, %45 : vector<40x128xf32>
    %59 = vector.extract_strided_slice %58 {offsets = [3, 0], sizes = [32, 128], strides = [1, 1]} : vector<40x128xf32> to vector<32x128xf32>
    %60 = arith.addf %56, %59 : vector<32x128xf32>
    %61 = arith.addf %33, %37 : vector<40x128xf32>
    %62 = arith.addf %61, %41 : vector<40x128xf32>
    %63 = arith.addf %62, %45 : vector<40x128xf32>
    %64 = vector.extract_strided_slice %63 {offsets = [4, 0], sizes = [32, 128], strides = [1, 1]} : vector<40x128xf32> to vector<32x128xf32>
    %65 = arith.addf %60, %64 : vector<32x128xf32>
    %66 = arith.addf %33, %37 : vector<40x128xf32>
    %67 = arith.addf %66, %41 : vector<40x128xf32>
    %68 = vector.extract_strided_slice %67 {offsets = [5, 0], sizes = [32, 128], strides = [1, 1]} : vector<40x128xf32> to vector<32x128xf32>
    %69 = arith.addf %65, %68 : vector<32x128xf32>
    %70 = arith.addf %33, %37 : vector<40x128xf32>
    %71 = arith.addf %70, %41 : vector<40x128xf32>
    %72 = vector.extract_strided_slice %71 {offsets = [6, 0], sizes = [32, 128], strides = [1, 1]} : vector<40x128xf32> to vector<32x128xf32>
    %73 = arith.addf %69, %72 : vector<32x128xf32>
    %74 = arith.addf %33, %37 : vector<40x128xf32>
    %75 = arith.addf %74, %41 : vector<40x128xf32>
    %76 = vector.extract_strided_slice %75 {offsets = [7, 0], sizes = [32, 128], strides = [1, 1]} : vector<40x128xf32> to vector<32x128xf32>
    %77 = arith.addf %73, %76 : vector<32x128xf32>
    %cst_25 = arith.constant 4.000000e-02 : f32
    %78 = vector.broadcast %cst_25 : f32 to vector<32x128xf32>
    %79 = arith.mulf %77, %78 : vector<32x128xf32>
    %c0_26 = arith.constant 0 : index
    %80 = arith.index_cast %29 : i32 to index
    %c0_27 = arith.constant 0 : index
    %81 = vector.load %arg2[%c0_26, %80, %c0_27] : memref<1x32x128xf32, #tpu.memory_space<vmem>>, vector<1x32x128xf32>
    %82 = vector.shape_cast %81 : vector<1x32x128xf32> to vector<32x128xf32>
    %c0_28 = arith.constant 0 : index
    %83 = arith.index_cast %29 : i32 to index
    %c0_29 = arith.constant 0 : index
    %84 = vector.load %arg6[%c0_28, %83, %c0_29] : memref<1x32x128xf32, #tpu.memory_space<vmem>>, vector<1x32x128xf32>
    %85 = vector.shape_cast %84 : vector<1x32x128xf32> to vector<32x128xf32>
    %86 = vector.shape_cast %79 : vector<32x128xf32> to vector<1x32x128xf32>
    tpu.vector_store %arg6[%c0_28, %83, %c0_29], %86 {strides = array<i32>} : memref<1x32x128xf32, #tpu.memory_space<vmem>>, vector<1x32x128xf32>,
    %87 = arith.subf %82, %79 : vector<32x128xf32>
    %c0_30 = arith.constant 0 : index
    %88 = arith.index_cast %29 : i32 to index
    %c0_31 = arith.constant 0 : index
    %89 = vector.load %arg5[%c0_30, %88, %c0_31] : memref<1x32x128xf32, #tpu.memory_space<vmem>>, vector<1x32x128xf32>
    %90 = vector.shape_cast %89 : vector<1x32x128xf32> to vector<32x128xf32>
    %91 = vector.shape_cast %87 : vector<32x128xf32> to vector<1x32x128xf32>
    tpu.vector_store %arg5[%c0_30, %88, %c0_31], %91 {strides = array<i32>} : memref<1x32x128xf32, #tpu.memory_space<vmem>>, vector<1x32x128xf32>,
    %c1_i32_32 = arith.constant 1 : i32
    return
  }
  func.func @transform_0(%arg0: i32, %arg1: i32) -> (i32, i32, i32) {
    %c0_i32 = arith.constant 0 : i32
    %c0_i32_0 = arith.constant 0 : i32
    return %arg0, %arg1, %c0_i32 : i32, i32, i32
  }
  func.func @transform_1(%arg0: i32, %arg1: i32) -> (i32, i32, i32) {
    %c2_i32 = arith.constant 2 : i32
    %0 = arith.muli %arg1, %c2_i32 : i32
    %c1_i32 = arith.constant 1 : i32
    %1 = arith.subi %0, %c1_i32 : i32
    %c0_i32 = arith.constant 0 : i32
    %2 = arith.maxsi %1, %c0_i32 : i32
    %c0_i32_0 = arith.constant 0 : i32
    %c0_i32_1 = arith.constant 0 : i32
    return %arg0, %2, %c0_i32_0 : i32, i32, i32
  }
  func.func @transform_2(%arg0: i32, %arg1: i32) -> (i32, i32, i32) {
    %c1_i32 = arith.constant 1 : i32
    %0 = arith.addi %arg1, %c1_i32 : i32
    %c2_i32 = arith.constant 2 : i32
    %1 = arith.muli %0, %c2_i32 : i32
    %c5_i32 = arith.constant 5 : i32
    %2 = arith.minsi %1, %c5_i32 : i32
    %c0_i32 = arith.constant 0 : i32
    %c0_i32_0 = arith.constant 0 : i32
    return %arg0, %2, %c0_i32 : i32, i32, i32
  }
  func.func @transform_3(%arg0: i32, %arg1: i32) -> (i32, i32, i32) {
    %c0_i32 = arith.constant 0 : i32
    %c0_i32_0 = arith.constant 0 : i32
    return %arg0, %arg1, %c0_i32 : i32, i32, i32
  }
  func.func @transform_4(%arg0: i32, %arg1: i32) -> (i32, i32, i32) {
    %c0_i32 = arith.constant 0 : i32
    %c0_i32_0 = arith.constant 0 : i32
    return %arg0, %arg1, %c0_i32 : i32, i32, i32
  }
}

</mosaic_0001>

<llo_original>
// kernel: tpu_custom_call.1
$region0: #{tpu_custom_call.1}
  #allocation0 [shape = 'u32[]', space=smem, size = 0x4, offset = 0x4, fixed_abs, tag = 'smem constant byte address 0x4 - core index']
  #allocation1 [shape = 'u32[144,128]{1,0:T(1,128)}', space=vmem, size = 0x12000, scoped, tag = 'internal scratch']
  #allocation2 [shape = 'f32[64,128]{1,0:T(8,128)}', space=vmem, size = 0x8000, scoped, tag = 'scratch operand']
  %s0 = inlined_call_operand.hbm [shape: f32[2,96,128], index: 0, kind: input, shape index: {}]
  %s1 = inlined_call_operand.hbm [shape: f32[2,96,128], index: 1, kind: input, shape index: {}]
  %s2 = inlined_call_operand.hbm [shape: f32[2,96,128], index: 2, kind: input, shape index: {}]
  %s3 = inlined_call_operand.hbm [shape: f32[2,96,128], index: 3, kind: output, shape index: {0}]
  %s4 = inlined_call_operand.hbm [shape: f32[2,96,128], index: 4, kind: output, shape index: {1}]
  %5 = xla_tuple %s3, %s4
  %s6 = sld [smem:[#allocation0]]
  $region81: #{tpu_custom_call.1} parent=0
    _
  %s8 = ssub.s32 1, %s6
  %s9 = scalar_select 0, %s8, %s6
  $region1: #{tpu_custom_call.1} parent=0
    #allocation3 [shape = 'u8[32768]{0}', space=vmem, size = 0x8000, scoped, tag = 'input window, operand 0']
    #allocation4 [shape = 's32[2]{0}', space=sflag, size = 0x8, scoped, tag = 'scoped memory for tpu_custom_call.1']
    #allocation5 [shape = 's32[2]{0}', space=sflag, size = 0x8, scoped, tag = 'scoped memory for tpu_custom_call.1']
    #allocation6 [shape = 'u8[16384]{0}', space=vmem, size = 0x4000, scoped, tag = 'input window, operand 1']
    #allocation7 [shape = 's32[2]{0}', space=sflag, size = 0x8, scoped, tag = 'scoped memory for tpu_custom_call.1']
    #allocation8 [shape = 'u8[16384]{0}', space=vmem, size = 0x4000, scoped, tag = 'input window, operand 2']
    #allocation9 [shape = 'u8[32768]{0}', space=vmem, size = 0x8000, scoped, tag = 'output window, operand 0']
    #allocation10 [shape = 'u8[32768]{0}', space=vmem, size = 0x8000, scoped, tag = 'output window, operand 1']
    #allocation11 [shape = 's32[2]{0}', space=sflag, size = 0x8, scoped, tag = 'scoped memory for tpu_custom_call.1']
    %10 = vsyncpa [#allocation4], 0
    %s11 = scalar_lea.sflag [#allocation4], 1
    %12 = vsyncpa %s11, 0
    %13 = vsyncpa [#allocation7], 0
    %s14 = scalar_lea.sflag [#allocation7], 1
    %15 = vsyncpa %s14, 0
    %16 = vsyncpa [#allocation5], 0
    %s17 = scalar_lea.sflag [#allocation5], 1
    %18 = vsyncpa %s17, 0
    %19 = vsyncpa [#allocation11], 0
    %s20 = scalar_lea.sflag [#allocation11], 1
    %21 = vsyncpa %s20, 0
    loop: start=0, step=1, limit=8
    $region2: #{tpu_custom_call.1} parent=1 // loop_pre_header
      _
    $region3: #{tpu_custom_call.1} parent=1 // loop_header
      %s23 = sphi 0, %s27
      %p24 = scmp.ge.s32.totalorder %s23, 8
      %s30 = sphi 0, %s42
      %s31 = sphi 0, %s38
      %s32 = sphi 0, %s30
      %s33 = sphi 0, %s31
      %s34 = sphi 0, %s32
      %s35 = sphi 0, %s33
      %s47 = sphi 0, %s49
      %s50 = sphi 0, %s47
      %s51 = sphi 0, %s50
      %s67 = sphi 0, %s51
      %s83 = sphi 0, %s85
      %s86 = sphi 0, %s83
      %s87 = sphi 0, %s86
      %s103 = sphi 0, %s87
      %s119 = sphi 0, %s121
      %s122 = sphi 0, %s119
      %s123 = sphi 0, %s122
      %s139 = sphi 0, %s123
      %s147 = sphi 0, %s149
      %s150 = sphi 0, %s147
      %s151 = sphi 0, %s150
      %s167 = sphi 0, %s151
      %s175 = sphi 0, %s177
      %s178 = sphi 0, %s175
      %s179 = sphi 0, %s178
      %s195 = sphi 0, %s179
    $region4: #{tpu_custom_call.1} parent=1 // loop_header_branch
      %26 = sbr.rel (%p24) target = $region8
    $region5: #{tpu_custom_call.1} parent=1 // loop_body
      %s28 = ssub.s32 %s23, 1
      %s29 = ssub.s32 %s23, 2
      %s36 = sadd.s32 1, %s31
      %p37 = scmp.ge.s32.totalorder %s36, 3
      %s38 = scalar_select %p37, 0, %s36
      %s39 = sadd.s32 1, %s30
      %s40 = scalar_select %p37, %s39, %s30
      %p41 = scmp.ge.s32.totalorder %s40, 2
      %s42 = scalar_select %p41, 0, %s40
      %s43 = ssub.s32 %s30, %s42
      %s44 = ssub.s32 %s31, %s38
      %s45 = sor.u32 %s43, %s44
      %p46 = scmp.eq.s32.totalorder %s45, 0
      %s48 = sadd.s32 %s47, 1
      %s49 = scalar_select %p46, %s47, %s48
      %p52 = pneg %p46
      %p53 = scmp.eq.s32.totalorder %s23, 5
      %p54 = por %p52, %p53
      %p55 = scmp.ne.s32.totalorder %s47, %s50
      %p56 = scmp.eq.s32.totalorder %s23, 0
      %p57 = por %p55, %p56
      %p58 = scmp.ne.s32.totalorder %s47, %s50
      %p59 = scmp.eq.s32.totalorder %s28, 5
      %p60 = por %p58, %p59
      %p61 = scmp.ne.s32.totalorder %s50, %s51
      %p62 = scmp.eq.s32.totalorder %s28, 0
      %p63 = por %p61, %p62
      %p64 = scmp.ne.s32.totalorder %s50, %s51
      %p65 = scmp.eq.s32.totalorder %s29, 5
      %p66 = por %p64, %p65
      %p68 = scmp.ne.s32.totalorder %s51, %s67
      %p69 = scmp.eq.s32.totalorder %s29, 0
      %p70 = por %p68, %p69
      %s71 = smul.u32 %s31, 2
      %s72 = ssub.s32 %s71, 1
      %p73 = scmp.gt.s32.totalorder %s72, 0
      %s74 = scalar_select %p73, %s72, 0
      %s75 = smul.u32 %s38, 2
      %s76 = ssub.s32 %s75, 1
      %p77 = scmp.gt.s32.totalorder %s76, 0
      %s78 = scalar_select %p77, %s76, 0
      %s79 = ssub.s32 %s30, %s42
      %s80 = ssub.s32 %s74, %s78
      %s81 = sor.u32 %s79, %s80
      %p82 = scmp.eq.s32.totalorder %s81, 0
      %s84 = sadd.s32 %s83, 1
      %s85 = scalar_select %p82, %s83, %s84
      %p88 = pneg %p82
      %p89 = scmp.eq.s32.totalorder %s23, 5
      %p90 = por %p88, %p89
      %p91 = scmp.ne.s32.totalorder %s83, %s86
      %p92 = scmp.eq.s32.totalorder %s23, 0
      %p93 = por %p91, %p92
      %p94 = scmp.ne.s32.totalorder %s83, %s86
      %p95 = scmp.eq.s32.totalorder %s28, 5
      %p96 = por %p94, %p95
      %p97 = scmp.ne.s32.totalorder %s86, %s87
      %p98 = scmp.eq.s32.totalorder %s28, 0
      %p99 = por %p97, %p98
      %p100 = scmp.ne.s32.totalorder %s86, %s87
      %p101 = scmp.eq.s32.totalorder %s29, 5
      %p102 = por %p100, %p101
      %p104 = scmp.ne.s32.totalorder %s87, %s103
      %p105 = scmp.eq.s32.totalorder %s29, 0
      %p106 = por %p104, %p105
      %s107 = sadd.s32 %s31, 1
      %s108 = smul.u32 %s107, 2
      %p109 = scmp.lt.s32.totalorder %s108, 5
      %s110 = scalar_select %p109, %s108, 5
      %s111 = sadd.s32 %s38, 1
      %s112 = smul.u32 %s111, 2
      %p113 = scmp.lt.s32.totalorder %s112, 5
      %s114 = scalar_select %p113, %s112, 5
      %s115 = ssub.s32 %s30, %s42
      %s116 = ssub.s32 %s110, %s114
      %s117 = sor.u32 %s115, %s116
      %p118 = scmp.eq.s32.totalorder %s117, 0
      %s120 = sadd.s32 %s119, 1
      %s121 = scalar_select %p118, %s119, %s120
      %p124 = pneg %p118
      %p125 = scmp.eq.s32.totalorder %s23, 5
      %p126 = por %p124, %p125
      %p127 = scmp.ne.s32.totalorder %s119, %s122
      %p128 = scmp.eq.s32.totalorder %s23, 0
      %p129 = por %p127, %p128
      %p130 = scmp.ne.s32.totalorder %s119, %s122
      %p131 = scmp.eq.s32.totalorder %s28, 5
      %p132 = por %p130, %p131
      %p133 = scmp.ne.s32.totalorder %s122, %s123
      %p134 = scmp.eq.s32.totalorder %s28, 0
      %p135 = por %p133, %p134
      %p136 = scmp.ne.s32.totalorder %s122, %s123
      %p137 = scmp.eq.s32.totalorder %s29, 5
      %p138 = por %p136, %p137
      %p140 = scmp.ne.s32.totalorder %s123, %s139
      %p141 = scmp.eq.s32.totalorder %s29, 0
      %p142 = por %p140, %p141
      %s143 = ssub.s32 %s30, %s42
      %s144 = ssub.s32 %s31, %s38
      %s145 = sor.u32 %s143, %s144
      %p146 = scmp.eq.s32.totalorder %s145, 0
      %s148 = sadd.s32 %s147, 1
      %s149 = scalar_select %p146, %s147, %s148
      %p152 = pneg %p146
      %p153 = scmp.eq.s32.totalorder %s23, 5
      %p154 = por %p152, %p153
      %p155 = scmp.ne.s32.totalorder %s147, %s150
      %p156 = scmp.eq.s32.totalorder %s23, 0
      %p157 = por %p155, %p156
      %p158 = scmp.ne.s32.totalorder %s147, %s150
      %p159 = scmp.eq.s32.totalorder %s28, 5
      %p160 = por %p158, %p159
      %p161 = scmp.ne.s32.totalorder %s150, %s151
      %p162 = scmp.eq.s32.totalorder %s28, 0
      %p163 = por %p161, %p162
      %p164 = scmp.ne.s32.totalorder %s150, %s151
      %p165 = scmp.eq.s32.totalorder %s29, 5
      %p166 = por %p164, %p165
      %p168 = scmp.ne.s32.totalorder %s151, %s167
      %p169 = scmp.eq.s32.totalorder %s29, 0
      %p170 = por %p168, %p169
      %s171 = ssub.s32 %s30, %s42
      %s172 = ssub.s32 %s31, %s38
      %s173 = sor.u32 %s171, %s172
      %p174 = scmp.eq.s32.totalorder %s173, 0
      %s176 = sadd.s32 %s175, 1
      %s177 = scalar_select %p174, %s175, %s176
      %p180 = pneg %p174
      %p181 = scmp.eq.s32.totalorder %s23, 5
      %p182 = por %p180, %p181
      %p183 = scmp.ne.s32.totalorder %s175, %s178
      %p184 = scmp.eq.s32.totalorder %s23, 0
      %p185 = por %p183, %p184
      %p186 = scmp.ne.s32.totalorder %s175, %s178
      %p187 = scmp.eq.s32.totalorder %s28, 5
      %p188 = por %p186, %p187
      %p189 = scmp.ne.s32.totalorder %s178, %s179
      %p190 = scmp.eq.s32.totalorder %s28, 0
      %p191 = por %p189, %p190
      %p192 = scmp.ne.s32.totalorder %s178, %s179
      %p193 = scmp.eq.s32.totalorder %s29, 5
      %p194 = por %p192, %p193
      %p196 = scmp.ne.s32.totalorder %s179, %s195
      %p197 = scmp.eq.s32.totalorder %s29, 0
      %p198 = por %p196, %p197
      %p199 = scmp.le.s32.totalorder 1, %s23
      %p200 = scmp.lt.s32.totalorder %s23, 7
      %p201 = pnand %p199, %p200
      %p202 = pneg %p201
      // Predicated region
      $region9: #{tpu_custom_call.1} parent=5 // pred_check
        _
      $region10: #{tpu_custom_call.1} parent=5 // pred_check_branch
        %204 = sbr.rel (%p201) target = $region12
      $region11: #{tpu_custom_call.1} parent=5 // pred_region
        %s205 = ssub.s32 %s23, 1
      $region12: #{tpu_custom_call.1} parent=5 // pred_fallthru
        _
      %p206 = scmp.lt.s32.totalorder %s23, 6
      // Predicated region
      $region13: #{tpu_custom_call.1} parent=5 // pred_check
        %p207 = pneg %p206
      $region14: #{tpu_custom_call.1} parent=5 // pred_check_branch
        %209 = sbr.rel (%p207) target = $region16
      $region15: #{tpu_custom_call.1} parent=5 // pred_region
        // Predicated region
        $region17: #{tpu_custom_call.1} parent=15 // pred_check
          %p210 = pneg %p57
        $region18: #{tpu_custom_call.1} parent=15 // pred_check_branch
          %212 = sbr.rel (%p210) target = $region20
        $region19: #{tpu_custom_call.1} parent=15 // pred_region
          %s213 = sand.u32 %s47, 1
          %s214 = scalar_lea.sflag [#allocation4], %s213
          %s215 = sand.u32 %s47, 1
          %s216 = smul.addr %s215, 32
          %s217 = scalar_lea.vmem [#allocation3], %s216
          %s218 = smul.u32 4, %s31
          %s220 = ssub.s32 512, 512
          %221 = vsyncadd %s214, %s220
          %s222 = smul.addr %s30, 12
          %s223 = sadd.s32 %s218, %s222
          %s224 = smul.addr %s223, 128
          %s225 = scalar_lea.hbm %s0, %s224
          %s226 = sshll.u32 %s217, 4
          %s227 = int_to_ptr.vmem [resolvable:$true] %s226
          %232 = dma.hbm_to_vmem [thread:$0]  %s225, 512, %s227, %s214, 128, 128, 8
        $region20: #{tpu_custom_call.1} parent=15 // pred_fallthru
          _
        // Predicated region
        $region21: #{tpu_custom_call.1} parent=15 // pred_check
          %p233 = pneg %p93
        $region22: #{tpu_custom_call.1} parent=15 // pred_check_branch
          %235 = sbr.rel (%p233) target = $region24
        $region23: #{tpu_custom_call.1} parent=15 // pred_region
          %s236 = sand.u32 %s23, 1
          %s237 = scalar_lea.sflag [#allocation7], %s236
          %s238 = sand.u32 %s83, 1
          %s239 = smul.addr %s238, 16
          %s240 = scalar_lea.vmem [#allocation6], %s239
          %s241 = smul.u32 %s31, 2
          %s242 = ssub.s32 %s241, 1
          %p243 = scmp.gt.s32.totalorder %s242, 0
          %s244 = scalar_select %p243, %s242, 0
          %s245 = smul.u32 2, %s244
          %s247 = ssub.s32 256, 256
          %248 = vsyncadd %s237, %s247
          %s249 = smul.addr %s30, 12
          %s250 = sadd.s32 %s245, %s249
          %s251 = smul.addr %s250, 128
          %s252 = scalar_lea.hbm %s1, %s251
          %s253 = sshll.u32 %s240, 4
          %s254 = int_to_ptr.vmem [resolvable:$true] %s253
          %259 = dma.hbm_to_vmem [thread:$0]  %s252, 256, %s254, %s237, 128, 128, 8
        $region24: #{tpu_custom_call.1} parent=15 // pred_fallthru
          _
        // Predicated region
        $region25: #{tpu_custom_call.1} parent=15 // pred_check
          %p260 = pneg %p129
        $region26: #{tpu_custom_call.1} parent=15 // pred_check_branch
          %262 = sbr.rel (%p260) target = $region28
        $region27: #{tpu_custom_call.1} parent=15 // pred_region
          %s263 = sand.u32 %s23, 1
          %s264 = scalar_lea.sflag [#allocation7], %s263
          %s265 = sand.u32 %s119, 1
          %s266 = smul.addr %s265, 16
          %s267 = scalar_lea.vmem [#allocation8], %s266
          %s268 = sadd.s32 %s31, 1
          %s269 = smul.u32 %s268, 2
          %p270 = scmp.lt.s32.totalorder %s269, 5
          %s271 = scalar_select %p270, %s269, 5
          %s272 = smul.u32 2, %s271
          %s274 = ssub.s32 256, 256
          %275 = vsyncadd %s264, %s274
          %s276 = smul.addr %s30, 12
          %s277 = sadd.s32 %s272, %s276
          %s278 = smul.addr %s277, 128
          %s279 = scalar_lea.hbm %s2, %s278
          %s280 = sshll.u32 %s267, 4
          %s281 = int_to_ptr.vmem [resolvable:$true] %s280
          %286 = dma.hbm_to_vmem [thread:$0]  %s279, 256, %s281, %s264, 128, 128, 8
        $region28: #{tpu_custom_call.1} parent=15 // pred_fallthru
          _
      $region16: #{tpu_custom_call.1} parent=5 // pred_fallthru
        _
      %p287 = scmp.le.s32.totalorder 1, %s23
      %p288 = scmp.lt.s32.totalorder %s23, 7
      %p289 = pnand %p287, %p288
      %p290 = pneg %p289
      // Predicated region
      $region29: #{tpu_custom_call.1} parent=5 // pred_check
        _
      $region30: #{tpu_custom_call.1} parent=5 // pred_check_branch
        %292 = sbr.rel (%p289) target = $region32
      $region31: #{tpu_custom_call.1} parent=5 // pred_region
        %s293 = ssub.s32 %s23, 1
        %s294 = sand.u32 %s50, 1
        %s295 = scalar_lea.sflag [#allocation4], %s294
        %s296 = sand.u32 %s50, 1
        %s297 = smul.addr %s296, 32
        %s298 = scalar_lea.vmem [#allocation3], %s297
        // Predicated region
        $region33: #{tpu_custom_call.1} parent=31 // pred_check
          %p299 = pneg %p63
        $region34: #{tpu_custom_call.1} parent=31 // pred_check_branch
          %301 = sbr.rel (%p299) target = $region36
        $region35: #{tpu_custom_call.1} parent=31 // pred_region
          %302 = dma.done %s295, 512
        $region36: #{tpu_custom_call.1} parent=31 // pred_fallthru
          _
        %s303 = sand.u32 %s28, 1
        %s304 = scalar_lea.sflag [#allocation7], %s303
        %s305 = sand.u32 %s86, 1
        %s306 = smul.addr %s305, 16
        %s307 = scalar_lea.vmem [#allocation6], %s306
        // Predicated region
        $region37: #{tpu_custom_call.1} parent=31 // pred_check
          %p308 = pneg %p99
        $region38: #{tpu_custom_call.1} parent=31 // pred_check_branch
          %310 = sbr.rel (%p308) target = $region40
        $region39: #{tpu_custom_call.1} parent=31 // pred_region
          %311 = dma.done %s304, 256
        $region40: #{tpu_custom_call.1} parent=31 // pred_fallthru
          _
        %s312 = sand.u32 %s28, 1
        %s313 = scalar_lea.sflag [#allocation7], %s312
        %s314 = sand.u32 %s122, 1
        %s315 = smul.addr %s314, 16
        %s316 = scalar_lea.vmem [#allocation8], %s315
        // Predicated region
        $region41: #{tpu_custom_call.1} parent=31 // pred_check
          %p317 = pneg %p135
        $region42: #{tpu_custom_call.1} parent=31 // pred_check_branch
          %319 = sbr.rel (%p317) target = $region44
        $region43: #{tpu_custom_call.1} parent=31 // pred_region
          %320 = dma.done %s313, 256
        $region44: #{tpu_custom_call.1} parent=31 // pred_fallthru
          _
        %s321 = sand.u32 %s50, 1
        %s322 = scalar_lea.sflag [#allocation4], %s321
        %s323 = sand.u32 %s50, 1
        %s324 = smul.addr %s323, 32
        %s325 = scalar_lea.vmem [#allocation3], %s324
        %p326 = pneg %p63
        %p327 = pneg %p60
        %s328 = sand.u32 %s28, 1
        %s329 = scalar_lea.sflag [#allocation7], %s328
        %s330 = sand.u32 %s86, 1
        %s331 = smul.addr %s330, 16
        %s332 = scalar_lea.vmem [#allocation6], %s331
        %p333 = pneg %p99
        %p334 = pneg %p96
        %s335 = sand.u32 %s28, 1
        %s336 = scalar_lea.sflag [#allocation7], %s335
        %s337 = sand.u32 %s122, 1
        %s338 = smul.addr %s337, 16
        %s339 = scalar_lea.vmem [#allocation8], %s338
        %p340 = pneg %p135
        %p341 = pneg %p132
        %p342 = pneg %p163
        %p343 = pneg %p160
        %s344 = sand.u32 %s150, 1
        %s345 = scalar_lea.sflag [#allocation5], %s344
        %s346 = sand.u32 %s150, 1
        %s347 = smul.addr %s346, 32
        %s348 = scalar_lea.vmem [#allocation9], %s347
        %p349 = pneg %p191
        %p350 = pneg %p188
        %s351 = sand.u32 %s178, 1
        %s352 = scalar_lea.sflag [#allocation11], %s351
        %s353 = sand.u32 %s178, 1
        %s354 = smul.addr %s353, 32
        %s355 = scalar_lea.vmem [#allocation10], %s354
        %s356 = smul.u32 4, %s33
        %s357 = smul.u32 %s33, 2
        %s358 = ssub.s32 %s357, 1
        %p359 = scmp.gt.s32.totalorder %s358, 0
        %s360 = scalar_select %p359, %s358, 0
        %s361 = smul.u32 2, %s360
        %s362 = sadd.s32 %s33, 1
        %s363 = smul.u32 %s362, 2
        %p364 = scmp.lt.s32.totalorder %s363, 5
        %s365 = scalar_select %p364, %s363, 5
        %s366 = smul.u32 2, %s365
        %s367 = smul.u32 4, %s33
        %s368 = smul.u32 4, %s33
        %369 = vst [vmem:[#allocation2] sm:$0xf] 0.0
        %370 = vst [vmem:[#allocation2 + $0x3c] sm:$0xf] 0.0
        %v371 = vld [vmem:[%s298] sm:$0xff]
        %v372 = vld [vmem:[%s298 + $0x8] sm:$0xff]
        %v373 = vld [vmem:[%s298 + $0x10] sm:$0xff]
        %v374 = vld [vmem:[%s298 + $0x18] sm:$0xff]
        %s375 = sadd.s32 0, 16
        %s376 = scalar_lea.vmem [#allocation2], %s375
        %377 = vst [vmem:[%s376] sm:$0xff] %v371
        %378 = vst [vmem:[%s376 + $0x8] sm:$0xff] %v372
        %379 = vst [vmem:[%s376 + $0x10] sm:$0xff] %v373
        %380 = vst [vmem:[%s376 + $0x18] sm:$0xff] %v374
        %p381 = scmp.gt.s32.totalorder %s33, 0
        // Predicated region
        $region45: #{tpu_custom_call.1} parent=31 // pred_check
          %p382 = pneg %p381
        $region46: #{tpu_custom_call.1} parent=31 // pred_check_branch
          %384 = sbr.rel (%p382) target = $region48
        $region47: #{tpu_custom_call.1} parent=31 // pred_region
          %v385 = vld [vmem:[%s307 + $0x4] sm:$0xff]
          %v386 = vld [vmem:[%s307 + $0xc] sm:$0xf]
          %387 = vst [vmem:[#allocation2 + $0x4] sm:$0xff] %v385
          %388 = vst [vmem:[#allocation2 + $0xc] sm:$0xf] %v386
        $region48: #{tpu_custom_call.1} parent=31 // pred_fallthru
          _
        %p389 = scmp.eq.s32.totalorder %s33, 0
        // Predicated region
        $region49: #{tpu_custom_call.1} parent=31 // pred_check
          %p390 = pneg %p389
        $region50: #{tpu_custom_call.1} parent=31 // pred_check_branch
          %392 = sbr.rel (%p390) target = $region52
        $region51: #{tpu_custom_call.1} parent=31 // pred_region
          %v393 = vld [vmem:[%s298] sm:$0x1]
          %v394 = vlaneseq
          %v395 = vshrl.u32 %v394, 7
          %v396 = vsub.s32 0, %v395
          %v397 = vrot.slane %v393, %v396
          %398 = vst [vmem:[#allocation2 + $0x4] sm:$0xff] %v397
          %399 = vst [vmem:[#allocation2 + $0xc] sm:$0xf] %v397
        $region52: #{tpu_custom_call.1} parent=31 // pred_fallthru
          _
        %p400 = scmp.lt.s32.totalorder %s33, 2
        // Predicated region
        $region53: #{tpu_custom_call.1} parent=31 // pred_check
          %p401 = pneg %p400
        $region54: #{tpu_custom_call.1} parent=31 // pred_check_branch
          %403 = sbr.rel (%p401) target = $region56
        $region55: #{tpu_custom_call.1} parent=31 // pred_region
          %v404 = vld [vmem:[%s316] sm:$0xff]
          %v405 = vld [vmem:[%s316 + $0x8] sm:$0xf]
          %406 = vst [vmem:[#allocation2 + $0x30] sm:$0xff] %v404
          %407 = vst [vmem:[#allocation2 + $0x38] sm:$0xf] %v405
        $region56: #{tpu_custom_call.1} parent=31 // pred_fallthru
          _
        %p408 = scmp.eq.s32.totalorder %s33, 2
        // Predicated region
        $region57: #{tpu_custom_call.1} parent=31 // pred_check
          %p409 = pneg %p408
        $region58: #{tpu_custom_call.1} parent=31 // pred_check_branch
          %411 = sbr.rel (%p409) target = $region60
        $region59: #{tpu_custom_call.1} parent=31 // pred_region
          %v412 = vld [vmem:[%s298 + $0x1f] sm:$0x1]
          %v413 = vlaneseq
          %v414 = vshrl.u32 %v413, 7
          %v415 = vsub.s32 0, %v414
          %v416 = vrot.slane %v412, %v415
          %417 = vst [vmem:[#allocation2 + $0x30] sm:$0xff] %v416
          %418 = vst [vmem:[#allocation2 + $0x38] sm:$0xf] %v416
        $region60: #{tpu_custom_call.1} parent=31 // pred_fallthru
          _
        %v419 = vld [vmem:[#allocation2] sm:$0xff]
        %v420 = vld [vmem:[#allocation2 + $0x8] sm:$0xff]
        %v421 = vld [vmem:[#allocation2 + $0x10] sm:$0xff]
        %v422 = vld [vmem:[#allocation2 + $0x18] sm:$0xff]
        %v423 = vld [vmem:[#allocation2 + $0x20] sm:$0xff]
        %s424 = sadd.s32 0, 8
        %s425 = scalar_lea.vmem [#allocation2], %s424
        %v426 = vld [vmem:[%s425] sm:$0xff]
        %v427 = vld [vmem:[%s425 + $0x8] sm:$0xff]
        %v428 = vld [vmem:[%s425 + $0x10] sm:$0xff]
        %v429 = vld [vmem:[%s425 + $0x18] sm:$0xff]
        %v430 = vld [vmem:[%s425 + $0x20] sm:$0xff]
        %s431 = scalar_lea.vmem [#allocation2], %s375
        %v432 = vld [vmem:[%s431] sm:$0xff]
        %v433 = vld [vmem:[%s431 + $0x8] sm:$0xff]
        %v434 = vld [vmem:[%s431 + $0x10] sm:$0xff]
        %v435 = vld [vmem:[%s431 + $0x18] sm:$0xff]
        %v436 = vld [vmem:[%s431 + $0x20] sm:$0xff]
        %s437 = sadd.s32 0, 24
        %s438 = scalar_lea.vmem [#allocation2], %s437
        %v439 = vld [vmem:[%s438] sm:$0xff]
        %v440 = vld [vmem:[%s438 + $0x8] sm:$0xff]
        %v441 = vld [vmem:[%s438 + $0x10] sm:$0xff]
        %v442 = vld [vmem:[%s438 + $0x18] sm:$0xff]
        %v443 = vld [vmem:[%s438 + $0x20] sm:$0xff]
        %v444 = vadd.f32 %v426, %v432
        %v445 = vadd.f32 %v427, %v433
        %v446 = vadd.f32 %v428, %v434
        %v447 = vadd.f32 %v429, %v435
        %v448 = vadd.f32 %v430, %v436
        %v449 = vadd.f32 %v444, %v439
        %v450 = vadd.f32 %v445, %v440
        %v451 = vadd.f32 %v446, %v441
        %v452 = vadd.f32 %v447, %v442
        %v453 = vadd.f32 %v448, %v443
        %vm459 = vcmask 1046528
        %v460 = vrot.slane %v449, 1
        %v461 = vrot.slane %v450, 1
        %v462 = vsel %vm459, %v460, %v461
        %v463 = vrot.slane %v451, 1
        %v464 = vsel %vm459, %v461, %v463
        %v465 = vrot.slane %v452, 1
        %v466 = vsel %vm459, %v463, %v465
        %v467 = vrot.slane %v453, 1
        %v468 = vsel %vm459, %v465, %v467
        %v473 = vadd.f32 %v449, %v462
        %v474 = vadd.f32 %v450, %v464
        %v475 = vadd.f32 %v451, %v466
        %v476 = vadd.f32 %v452, %v468
        %vm477 = vcmask 1045504
        %v478 = vrot.slane %v449, 2
        %v479 = vrot.slane %v450, 2
        %v480 = vsel %vm477, %v478, %v479
        %v481 = vrot.slane %v451, 2
        %v482 = vsel %vm477, %v479, %v481
        %v483 = vrot.slane %v452, 2
        %v484 = vsel %vm477, %v481, %v483
        %v485 = vrot.slane %v453, 2
        %v486 = vsel %vm477, %v483, %v485
        %v491 = vadd.f32 %v473, %v480
        %v492 = vadd.f32 %v474, %v482
        %v493 = vadd.f32 %v475, %v484
        %v494 = vadd.f32 %v476, %v486
        %vm495 = vcmask 1044480
        %v496 = vrot.slane %v449, 3
        %v497 = vrot.slane %v450, 3
        %v498 = vsel %vm495, %v496, %v497
        %v499 = vrot.slane %v451, 3
        %v500 = vsel %vm495, %v497, %v499
        %v501 = vrot.slane %v452, 3
        %v502 = vsel %vm495, %v499, %v501
        %v503 = vrot.slane %v453, 3
        %v504 = vsel %vm495, %v501, %v503
        %v509 = vadd.f32 %v491, %v498
        %v510 = vadd.f32 %v492, %v500
        %v511 = vadd.f32 %v493, %v502
        %v512 = vadd.f32 %v494, %v504
        %v513 = vadd.f32 %v419, %v426
        %v514 = vadd.f32 %v420, %v427
        %v515 = vadd.f32 %v421, %v428
        %v516 = vadd.f32 %v422, %v429
        %v517 = vadd.f32 %v423, %v430
        %v518 = vadd.f32 %v513, %v432
        %v519 = vadd.f32 %v514, %v433
        %v520 = vadd.f32 %v515, %v434
        %v521 = vadd.f32 %v516, %v435
        %v522 = vadd.f32 %v517, %v436
        %v523 = vadd.f32 %v518, %v439
        %v524 = vadd.f32 %v519, %v440
        %v525 = vadd.f32 %v520, %v441
        %v526 = vadd.f32 %v521, %v442
        %v527 = vadd.f32 %v522, %v443
        %vm533 = vcmask 1043456
        %v534 = vrot.slane %v523, 4
        %v535 = vrot.slane %v524, 4
        %v536 = vsel %vm533, %v534, %v535
        %v537 = vrot.slane %v525, 4
        %v538 = vsel %vm533, %v535, %v537
        %v539 = vrot.slane %v526, 4
        %v540 = vsel %vm533, %v537, %v539
        %v541 = vrot.slane %v527, 4
        %v542 = vsel %vm533, %v539, %v541
        %v547 = vadd.f32 %v509, %v536
        %v548 = vadd.f32 %v510, %v538
        %v549 = vadd.f32 %v511, %v540
        %v550 = vadd.f32 %v512, %v542
        %vm556 = vcmask 1042432
        %v557 = vrot.slane %v518, 5
        %v558 = vrot.slane %v519, 5
        %v559 = vsel %vm556, %v557, %v558
        %v560 = vrot.slane %v520, 5
        %v561 = vsel %vm556, %v558, %v560
        %v562 = vrot.slane %v521, 5
        %v563 = vsel %vm556, %v560, %v562
        %v564 = vrot.slane %v522, 5
        %v565 = vsel %vm556, %v562, %v564
        %v570 = vadd.f32 %v547, %v559
        %v571 = vadd.f32 %v548, %v561
        %v572 = vadd.f32 %v549, %v563
        %v573 = vadd.f32 %v550, %v565
        %vm574 = vcmask 1041408
        %v575 = vrot.slane %v518, 6
        %v576 = vrot.slane %v519, 6
        %v577 = vsel %vm574, %v575, %v576
        %v578 = vrot.slane %v520, 6
        %v579 = vsel %vm574, %v576, %v578
        %v580 = vrot.slane %v521, 6
        %v581 = vsel %vm574, %v578, %v580
        %v582 = vrot.slane %v522, 6
        %v583 = vsel %vm574, %v580, %v582
        %v588 = vadd.f32 %v570, %v577
        %v589 = vadd.f32 %v571, %v579
        %v590 = vadd.f32 %v572, %v581
        %v591 = vadd.f32 %v573, %v583
        %vm592 = vcmask 1040384
        %v593 = vrot.slane %v518, 7
        %v594 = vrot.slane %v519, 7
        %v595 = vsel %vm592, %v593, %v594
        %v596 = vrot.slane %v520, 7
        %v597 = vsel %vm592, %v594, %v596
        %v598 = vrot.slane %v521, 7
        %v599 = vsel %vm592, %v596, %v598
        %v600 = vrot.slane %v522, 7
        %v601 = vsel %vm592, %v598, %v600
        %v606 = vadd.f32 %v588, %v595
        %v607 = vadd.f32 %v589, %v597
        %v608 = vadd.f32 %v590, %v599
        %v609 = vadd.f32 %v591, %v601
        %v610 = vmul.f32 %v606, 0.04
        %v611 = vmul.f32 %v607, 0.04
        %v612 = vmul.f32 %v608, 0.04
        %v613 = vmul.f32 %v609, 0.04
        %v614 = vld [vmem:[%s298] sm:$0xff]
        %v615 = vld [vmem:[%s298 + $0x8] sm:$0xff]
        %v616 = vld [vmem:[%s298 + $0x10] sm:$0xff]
        %v617 = vld [vmem:[%s298 + $0x18] sm:$0xff]
        %618 = vst [vmem:[%s355] sm:$0xff] %v610
        %619 = vst [vmem:[%s355 + $0x8] sm:$0xff] %v611
        %620 = vst [vmem:[%s355 + $0x10] sm:$0xff] %v612
        %621 = vst [vmem:[%s355 + $0x18] sm:$0xff] %v613
        %v622 = vsub.f32 %v614, %v610
        %v623 = vsub.f32 %v615, %v611
        %v624 = vsub.f32 %v616, %v612
        %v625 = vsub.f32 %v617, %v613
        %626 = vst [vmem:[%s348] sm:$0xff] %v622
        %627 = vst [vmem:[%s348 + $0x8] sm:$0xff] %v623
        %628 = vst [vmem:[%s348 + $0x10] sm:$0xff] %v624
        %629 = vst [vmem:[%s348 + $0x18] sm:$0xff] %v625
        %s630 = sand.u32 %s150, 1
        %s631 = scalar_lea.sflag [#allocation5], %s630
        %s632 = sand.u32 %s150, 1
        %s633 = smul.addr %s632, 32
        %s634 = scalar_lea.vmem [#allocation9], %s633
        %s635 = sand.u32 %s178, 1
        %s636 = scalar_lea.sflag [#allocation11], %s635
        %s637 = sand.u32 %s178, 1
        %s638 = smul.addr %s637, 32
        %s639 = scalar_lea.vmem [#allocation10], %s638
        // Predicated region
        $region61: #{tpu_custom_call.1} parent=31 // pred_check
          %p640 = pneg %p160
        $region62: #{tpu_custom_call.1} parent=31 // pred_check_branch
          %642 = sbr.rel (%p640) target = $region64
        $region63: #{tpu_custom_call.1} parent=31 // pred_region
          %s643 = smul.u32 4, %s33
          %s645 = ssub.s32 512, 512
          %646 = vsyncadd %s631, %s645
          %s647 = smul.addr %s32, 12
          %s648 = sadd.s32 %s643, %s647
          %s649 = smul.addr %s648, 128
          %s650 = scalar_lea.hbm %s3, %s649
          %s651 = sshll.u32 %s634, 4
          %s652 = int_to_ptr.vmem [resolvable:$true] %s651
          %657 = dma.vmem_to_hbm [thread:$0]  %s652, 512, %s650, %s631, 128, 128, 8
        $region64: #{tpu_custom_call.1} parent=31 // pred_fallthru
          _
        // Predicated region
        $region65: #{tpu_custom_call.1} parent=31 // pred_check
          %p658 = pneg %p188
        $region66: #{tpu_custom_call.1} parent=31 // pred_check_branch
          %660 = sbr.rel (%p658) target = $region68
        $region67: #{tpu_custom_call.1} parent=31 // pred_region
          %s661 = smul.u32 4, %s33
          %s663 = ssub.s32 512, 512
          %664 = vsyncadd %s636, %s663
          %s665 = smul.addr %s32, 12
          %s666 = sadd.s32 %s661, %s665
          %s667 = smul.addr %s666, 128
          %s668 = scalar_lea.hbm %s4, %s667
          %s669 = sshll.u32 %s639, 4
          %s670 = int_to_ptr.vmem [resolvable:$true] %s669
          %675 = dma.vmem_to_hbm [thread:$0]  %s670, 512, %s668, %s636, 128, 128, 8
        $region68: #{tpu_custom_call.1} parent=31 // pred_fallthru
          _
      $region32: #{tpu_custom_call.1} parent=5 // pred_fallthru
        _
      %p676 = scmp.le.s32.totalorder 2, %s23
      // Predicated region
      $region69: #{tpu_custom_call.1} parent=5 // pred_check
        %p677 = pneg %p676
      $region70: #{tpu_custom_call.1} parent=5 // pred_check_branch
        %679 = sbr.rel (%p677) target = $region72
      $region71: #{tpu_custom_call.1} parent=5 // pred_region
        %s680 = ssub.s32 %s23, 2
        // Predicated region
        $region73: #{tpu_custom_call.1} parent=71 // pred_check
          %p681 = pneg %p166
        $region74: #{tpu_custom_call.1} parent=71 // pred_check_branch
          %683 = sbr.rel (%p681) target = $region76
        $region75: #{tpu_custom_call.1} parent=71 // pred_region
          %s684 = sand.u32 %s151, 1
          %s685 = scalar_lea.sflag [#allocation5], %s684
          %s686 = sand.u32 %s151, 1
          %s687 = smul.addr %s686, 32
          %s688 = scalar_lea.vmem [#allocation9], %s687
          %689 = dma.done %s685, 512
        $region76: #{tpu_custom_call.1} parent=71 // pred_fallthru
          _
        // Predicated region
        $region77: #{tpu_custom_call.1} parent=71 // pred_check
          %p690 = pneg %p194
        $region78: #{tpu_custom_call.1} parent=71 // pred_check_branch
          %692 = sbr.rel (%p690) target = $region80
        $region79: #{tpu_custom_call.1} parent=71 // pred_region
          %s693 = sand.u32 %s179, 1
          %s694 = scalar_lea.sflag [#allocation11], %s693
          %s695 = sand.u32 %s179, 1
          %s696 = smul.addr %s695, 32
          %s697 = scalar_lea.vmem [#allocation10], %s696
          %698 = dma.done %s694, 512
        $region80: #{tpu_custom_call.1} parent=71 // pred_fallthru
          _
      $region72: #{tpu_custom_call.1} parent=5 // pred_fallthru
        _
    $region6: #{tpu_custom_call.1} parent=1 // loop_footer
      %s27 = sadd.s32 1, %s23
    $region7: #{tpu_custom_call.1} parent=1 // loop_footer_branch
      %22 = sbr.rel target = $region3
    $region8: #{tpu_custom_call.1} parent=1 // loop_exit
      _
    %699 = vsyncpa [#allocation4], 1
    %s700 = scalar_lea.sflag [#allocation4], 1
    %701 = vsyncpa %s700, 1
    %702 = vsyncpa [#allocation7], 1
    %s703 = scalar_lea.sflag [#allocation7], 1
    %704 = vsyncpa %s703, 1
    %705 = vsyncpa [#allocation5], 1
    %s706 = scalar_lea.sflag [#allocation5], 1
    %707 = vsyncpa %s706, 1
    %708 = vsyncpa [#allocation11], 1
    %s709 = scalar_lea.sflag [#allocation11], 1
    %710 = vsyncpa %s709, 1

</llo_original>
